<compile_context>
chip_gen: v7x
topology: tpu7x:2x2x1
jax: 0.10.0
libtpu: 0.0.40
codegen_flags: <defaults>
</compile_context>

<pallas_src>
import functools

import jax
import jax.numpy as jnp
from jax.experimental import pallas as pl
from jax.experimental.pallas import tpu as pltpu

NEG_SLOPE = 0.01   # F.leaky_relu default
BN_EPS = 1e-5      # BatchNorm1d default
LANE = 128


def _leaky_relu(x):
    return jnp.where(x > 0, x, NEG_SLOPE * x)


def _round_up(v, m):
    return (v + m - 1) // m * m


# ----------------------------------------------------------------------------
# Kernels
# ----------------------------------------------------------------------------
def _first_lin_kernel(x_ref, w0_ref, b0_ref, x1_ref):
    # x1 = leaky_relu(x @ W0 + b0), one row strip per grid step.
    x1_ref[...] = _leaky_relu(
        jnp.dot(x_ref[...], w0_ref[...], preferred_element_type=jnp.float32)
        + b0_ref[...]
    )


def _sage1_kernel(tile_m,
                  a_ref, x1_ref,
                  wl1_ref, bl1_ref, wr1_ref, s1_ref, t1_ref,
                  h1_ref):
    # h1_strip = bn1(leaky_relu((A_strip @ x1) @ Wl1 + bl1 + x1_strip @ Wr1))
    f32 = jnp.float32
    i = pl.program_id(0)
    row0 = pl.multiple_of(i * tile_m, tile_m)
    x1_strip = x1_ref[pl.ds(row0, tile_m), :]

    # O(N^2) term: bf16 A strip x bf16 resident x1, f32 accumulation on the MXU.
    agg1 = jnp.dot(a_ref[...], x1_ref[...].astype(jnp.bfloat16),
                   preferred_element_type=f32)
    h1 = (jnp.dot(agg1, wl1_ref[...], preferred_element_type=f32)
          + bl1_ref[...]
          + jnp.dot(x1_strip, wr1_ref[...], preferred_element_type=f32))
    # BN (eval) folded to scale/shift; dropout is an eval-mode identity.
    # TODO(synk): F.dropout(training=True) is stochastic; eval forward only here.
    h1_ref[...] = _leaky_relu(h1) * s1_ref[...] + t1_ref[...]


def _sage2_kernel(num_class, tile_m,
                  a_ref, x1_ref, h1_ref,
                  wl2_ref, bl2_ref, wr2_ref, s2_ref, t2_ref,
                  w2a_ref, w2b_ref, w2c_ref, b2_ref,
                  out_ref):
    # h2 strip, concat-lin2 (as split matmul) and log_softmax, fused per strip.
    f32 = jnp.float32
    i = pl.program_id(0)
    row0 = pl.multiple_of(i * tile_m, tile_m)
    x1_strip = x1_ref[pl.ds(row0, tile_m), :]
    h1_strip = h1_ref[pl.ds(row0, tile_m), :]

    agg2 = jnp.dot(a_ref[...], h1_ref[...].astype(jnp.bfloat16),
                   preferred_element_type=f32)
    h2 = (jnp.dot(agg2, wl2_ref[...], preferred_element_type=f32)
          + bl2_ref[...]
          + jnp.dot(h1_strip, wr2_ref[...], preferred_element_type=f32))
    h2 = _leaky_relu(h2) * s2_ref[...] + t2_ref[...]

    # lin2 over concat([x1, h1, h2]) as a split matmul (no lane-dim concat).
    logits = (jnp.dot(x1_strip, w2a_ref[...], preferred_element_type=f32)
              + jnp.dot(h1_strip, w2b_ref[...], preferred_element_type=f32)
              + jnp.dot(h2, w2c_ref[...], preferred_element_type=f32)
              + b2_ref[...])

    # Mask padded class lanes before the log_softmax reduction.
    col = jax.lax.broadcasted_iota(jnp.int32, logits.shape, 1)
    logits = jnp.where(col < num_class, logits, -1e30)
    m = jnp.max(logits, axis=-1, keepdims=True)
    e = jnp.exp(logits - m)
    lse = jnp.log(jnp.sum(e, axis=-1, keepdims=True)) + m
    out_ref[...] = logits - lse


# ----------------------------------------------------------------------------
# Wrapper
# ----------------------------------------------------------------------------
def _pad2(a, rows, cols, value=0.0):
    return jnp.pad(a, ((0, rows - a.shape[0]), (0, cols - a.shape[1])),
                   constant_values=value)


def _bn_scale_shift(bn_p, c_pad):
    # bn_p: (4, C) rows = [gamma, beta, running_mean, running_var]
    gamma, beta, mean, var = bn_p
    scale = gamma * jax.lax.rsqrt(var + BN_EPS)
    shift = beta - mean * scale
    c = scale.shape[0]
    # Pad scale with 1 / shift with 0 so padded (zero) channels stay zero.
    scale = jnp.pad(scale, (0, c_pad - c), constant_values=1.0)[None, :]
    shift = jnp.pad(shift, (0, c_pad - c))[None, :]
    return scale, shift


def graphsage_forward(x, adj, params, *, tile_m=128,
                      vmem_limit_bytes=48 * 1024 * 1024):
    """Fused GraphSAGE forward.  tile_m: A row-strip height — 128 is safe on all
    generations at these shapes; raise to 256/512 (VMEM permitting: v7x has
    64 MiB physical) for large N to improve DMA/compute overlap."""
    n, f = x.shape
    h = params["w0_t"].shape[1]
    h2 = params["wl2_t"].shape[1]
    c = params["b2"].shape[-1]

    f_p = _round_up(f, LANE)
    h_p = _round_up(h, LANE)
    h2_p = _round_up(h2, LANE)
    c_p = _round_up(c, LANE)
    n_p = _round_up(n, tile_m)
    num_strips = n_p // tile_m

    # Zero-pad everything so padded feature/hidden/class columns stay zero.
    x_p = _pad2(x, n_p, f_p)
    a_p = _pad2(adj, n_p, n_p).astype(jnp.bfloat16)   # A dominates bytes moved

    w0 = _pad2(params["w0_t"], f_p, h_p);   b0 = _pad2(params["b0"], 1, h_p)
    wl1 = _pad2(params["wl1_t"], h_p, h_p); bl1 = _pad2(params["bl1"], 1, h_p)
    wr1 = _pad2(params["wr1_t"], h_p, h_p)
    s1, t1 = _bn_scale_shift(params["bn1"], h_p)
    wl2 = _pad2(params["wl2_t"], h_p, h2_p); bl2 = _pad2(params["bl2"], 1, h2_p)
    wr2 = _pad2(params["wr2_t"], h_p, h2_p)
    s2, t2 = _bn_scale_shift(params["bn2"], h2_p)
    w2a = _pad2(params["w2a_t"], h_p, c_p)
    w2b = _pad2(params["w2b_t"], h_p, c_p)
    w2c = _pad2(params["w2c_t"], h2_p, c_p)
    b2 = _pad2(params["b2"], 1, c_p)

    cparams = pltpu.CompilerParams(
        dimension_semantics=("parallel",),
        vmem_limit_bytes=vmem_limit_bytes,
    )

    def const_spec(arr):
        # Full-array block, constant index -> DMA'd once, resident across strips.
        return pl.BlockSpec(arr.shape, lambda i: (0, 0))

    def row_spec(cols):
        return pl.BlockSpec((tile_m, cols), lambda i: (i, 0))

    # ---- kernel 1: x1 = leaky_relu(first_lin(x)) ------------------------------
    x1 = pl.pallas_call(
        _first_lin_kernel,
        grid=(num_strips,),
        in_specs=[row_spec(f_p), const_spec(w0), const_spec(b0)],
        out_specs=row_spec(h_p),
        out_shape=jax.ShapeDtypeStruct((n_p, h_p), jnp.float32),
        compiler_params=cparams,
    )(x_p, w0, b0)

    # ---- kernel 2: h1 = bn1(leaky_relu(SAGEConv1(x1, A))) ---------------------
    ce2 = pl.CostEstimate(
        flops=2 * n_p * n_p * h_p + 4 * n_p * h_p * h_p,
        transcendentals=0,
        bytes_accessed=n_p * n_p * 2 + 2 * n_p * h_p * 4,
    )
    h1 = pl.pallas_call(
        functools.partial(_sage1_kernel, tile_m),
        grid=(num_strips,),
        in_specs=[row_spec(n_p), const_spec(x1),
                  const_spec(wl1), const_spec(bl1), const_spec(wr1),
                  const_spec(s1), const_spec(t1)],
        out_specs=row_spec(h_p),
        out_shape=jax.ShapeDtypeStruct((n_p, h_p), jnp.float32),
        compiler_params=cparams,
        cost_estimate=ce2,
    )(a_p, x1, wl1, bl1, wr1, s1, t1)

    # ---- kernel 3: h2, lin2(concat), log_softmax ------------------------------
    ce3 = pl.CostEstimate(
        flops=2 * n_p * n_p * h_p + 4 * n_p * h_p * h2_p + 6 * n_p * h_p * c_p,
        transcendentals=n_p * (c_p + 1),
        bytes_accessed=n_p * n_p * 2 + 3 * n_p * h_p * 4 + n_p * c_p * 4,
    )
    out_p = pl.pallas_call(
        functools.partial(_sage2_kernel, c, tile_m),
        grid=(num_strips,),
        in_specs=[row_spec(n_p), const_spec(x1), const_spec(h1),
                  const_spec(wl2), const_spec(bl2), const_spec(wr2),
                  const_spec(s2), const_spec(t2),
                  const_spec(w2a), const_spec(w2b), const_spec(w2c),
                  const_spec(b2)],
        out_specs=row_spec(c_p),
        out_shape=jax.ShapeDtypeStruct((n_p, c_p), jnp.float32),
        compiler_params=cparams,
        cost_estimate=ce3,
    )(a_p, x1, h1, wl2, bl2, wr2, s2, t2, w2a, w2b, w2c, b2)

    return out_p[:n, :c]


# ----------------------------------------------------------------------------
# Parameter / graph construction and reference
# ----------------------------------------------------------------------------
def init_params(key, features_num, hidden, hidden2, num_class):
    """Deterministic synthetic parameter init (shapes follow the PyTorch module)."""
    ks = jax.random.split(key, 16)

    def lin(k, fan_in, fan_out):
        scale = 1.0 / jnp.sqrt(fan_in)
        return jax.random.uniform(k, (fan_in, fan_out), jnp.float32, -scale, scale)

    def bias(k, fan_in, fan_out):
        scale = 1.0 / jnp.sqrt(fan_in)
        return jax.random.uniform(k, (1, fan_out), jnp.float32, -scale, scale)

    def bn(kg, kb, ch):
        gamma = 1.0 + 0.1 * jax.random.normal(kg, (ch,), jnp.float32)
        beta = 0.1 * jax.random.normal(kb, (ch,), jnp.float32)
        mean = jnp.zeros((ch,), jnp.float32)
        var = jnp.ones((ch,), jnp.float32)
        return jnp.stack([gamma, beta, mean, var], axis=0)  # (4, ch)

    outdim = hidden + hidden + hidden2  # agg == 'concat'
    w2_t = lin(ks[10], outdim, num_class)
    return {
        "w0_t": lin(ks[0], features_num, hidden),
        "b0": bias(ks[1], features_num, hidden),
        "wl1_t": lin(ks[2], hidden, hidden),
        "bl1": bias(ks[3], hidden, hidden),
        "wr1_t": lin(ks[4], hidden, hidden),
        "bn1": bn(ks[5], ks[6], hidden),
        "wl2_t": lin(ks[7], hidden, hidden2),
        "bl2": bias(ks[8], hidden, hidden2),
        "wr2_t": lin(ks[9], hidden, hidden2),
        "bn2": bn(ks[11], ks[12], hidden2),
        "w2a_t": w2_t[:hidden, :],
        "w2b_t": w2_t[hidden:2 * hidden, :],
        "w2c_t": w2_t[2 * hidden:, :],
        "b2": bias(ks[13], outdim, num_class),
    }


def build_dense_adj(n, edge_index, edge_weight):
    """Row-normalized weighted adjacency: A[i, j] = w(j->i) / in_degree(i)."""
    src, dst = edge_index
    a = jnp.zeros((n, n), jnp.float32).at[dst, src].add(edge_weight)
    cnt = jnp.zeros((n,), jnp.float32).at[dst].add(1.0)
    return a / jnp.clip(cnt, 1.0, None)[:, None]


def reference_forward(x, adj, params):
    """Pure-JAX f32 reference of the same forward pass."""
    def bn(v, p):
        gamma, beta, mean, var = p
        return (v - mean) * gamma * jax.lax.rsqrt(var + BN_EPS) + beta

    x1 = _leaky_relu(x @ params["w0_t"] + params["b0"])
    h1 = bn(_leaky_relu((adj @ x1) @ params["wl1_t"] + params["bl1"]
                        + x1 @ params["wr1_t"]), params["bn1"])
    h2 = bn(_leaky_relu((adj @ h1) @ params["wl2_t"] + params["bl2"]
                        + h1 @ params["wr2_t"]), params["bn2"])
    logits = (x1 @ params["w2a_t"] + h1 @ params["w2b_t"]
              + h2 @ params["w2c_t"] + params["b2"])
    return jax.nn.log_softmax(logits, axis=-1)


if __name__ == "__main__":
    N, FEATURES, HIDDEN, HIDDEN2, NUM_CLASS = 300, 16, 32, 16, 7
    NUM_EDGES = 1200

    key = jax.random.PRNGKey(0)
    kx, ke1, ke2, kw, kp = jax.random.split(key, 5)

    x = jax.random.normal(kx, (N, FEATURES), jnp.float32)
    src = jax.random.randint(ke1, (NUM_EDGES,), 0, N)
    dst = jax.random.randint(ke2, (NUM_EDGES,), 0, N)
    edge_weight = jax.random.uniform(kw, (NUM_EDGES,), jnp.float32, 0.5, 1.5)

    adj = build_dense_adj(N, (src, dst), edge_weight)
    params = init_params(kp, FEATURES, HIDDEN, HIDDEN2, NUM_CLASS)

    out = graphsage_forward(x, adj, params, tile_m=128)
    out = jax.block_until_ready(out)

    assert out.shape == (N, NUM_CLASS)
    assert bool(jnp.all(jnp.isfinite(out)))
    # log_softmax rows should (exp-)sum to ~1 over the valid classes
    assert bool(jnp.allclose(jnp.sum(jnp.exp(out), axis=-1), 1.0, atol=1e-4))
    # bf16 adjacency vs f32 reference -> loose tolerance
    ref = reference_forward(x, adj, params)
    assert float(jnp.max(jnp.abs(out - ref))) < 0.15
    print("KERNEL_OK")
</pallas_src>

<mosaic_0001>
module attributes {stable_mosaic.version = 11 : i64} {
  func.func @_first_lin_kernel(%arg0: i32, %arg1: memref<128x128xf32, #tpu.memory_space<vmem>>, %arg2: memref<128x128xf32, #tpu.memory_space<vmem>>, %arg3: memref<1x128xf32, #tpu.memory_space<vmem>>, %arg4: memref<128x128xf32, #tpu.memory_space<vmem>>) attributes {dimension_semantics = [#tpu.dimension_semantics<parallel>], iteration_bounds = array<i64: 3>, scalar_prefetch = 0 : i64, scratch_operands = 0 : i64, tpu.core_type = #tpu.core_type<tc>, window_params = [{transform_indices = @transform_0, window_bounds = array<i64: 128, 128>}, {pipeline_mode = #tpu.pipeline_mode<synchronous>, transform_indices = @transform_1, window_bounds = array<i64: 128, 128>}, {pipeline_mode = #tpu.pipeline_mode<synchronous>, transform_indices = @transform_2, window_bounds = array<i64: 1, 128>}, {transform_indices = @transform_3, window_bounds = array<i64: 128, 128>}]} {
    %c0 = arith.constant 0 : index
    %c0_0 = arith.constant 0 : index
    %0 = vector.load %arg1[%c0, %c0_0] : memref<128x128xf32, #tpu.memory_space<vmem>>, vector<128x128xf32>
    %c0_1 = arith.constant 0 : index
    %c0_2 = arith.constant 0 : index
    %1 = vector.load %arg2[%c0_1, %c0_2] : memref<128x128xf32, #tpu.memory_space<vmem>>, vector<128x128xf32>
    %cst = arith.constant dense<0.000000e+00> : vector<128x128xf32>
    %2 = tpu.matmul %0, %1, %cst {dimension_numbers = #tpu.dot_dimension_numbers<[1], [0], [0], [1], [0, 0, 1, 1], [], []>} : vector<128x128xf32>, vector<128x128xf32>, vector<128x128xf32> -> vector<128x128xf32>
    %c0_3 = arith.constant 0 : index
    %c0_4 = arith.constant 0 : index
    %3 = vector.load %arg3[%c0_3, %c0_4] : memref<1x128xf32, #tpu.memory_space<vmem>>, vector<1x128xf32>
    %4 = vector.broadcast %3 : vector<1x128xf32> to vector<128x128xf32>
    %5 = arith.addf %2, %4 : vector<128x128xf32>
    %cst_5 = arith.constant 0.000000e+00 : f32
    %6 = vector.broadcast %cst_5 : f32 to vector<128x128xf32>
    %7 = arith.cmpf ogt, %5, %6 : vector<128x128xf32>
    %cst_6 = arith.constant 0.00999999977 : f32
    %8 = vector.broadcast %cst_6 : f32 to vector<128x128xf32>
    %9 = arith.mulf %8, %5 : vector<128x128xf32>
    %10 = arith.select %7, %5, %9 : vector<128x128xi1>, vector<128x128xf32>
    %c0_7 = arith.constant 0 : index
    %c0_8 = arith.constant 0 : index
    %11 = vector.load %arg4[%c0_7, %c0_8] : memref<128x128xf32, #tpu.memory_space<vmem>>, vector<128x128xf32>
    tpu.vector_store %arg4[%c0_7, %c0_8], %10 {strides = array<i32>} : memref<128x128xf32, #tpu.memory_space<vmem>>, vector<128x128xf32>,
    return
  }
  func.func @transform_0(%arg0: i32) -> (i32, i32) {
    %c0_i32 = arith.constant 0 : i32
    %c0_i32_0 = arith.constant 0 : i32
    return %arg0, %c0_i32 : i32, i32
  }
  func.func @transform_1(%arg0: i32) -> (i32, i32) {
    %c0_i32 = arith.constant 0 : i32
    %c0_i32_0 = arith.constant 0 : i32
    %c0_i32_1 = arith.constant 0 : i32
    return %c0_i32, %c0_i32_0 : i32, i32
  }
  func.func @transform_2(%arg0: i32) -> (i32, i32) {
    %c0_i32 = arith.constant 0 : i32
    %c0_i32_0 = arith.constant 0 : i32
    %c0_i32_1 = arith.constant 0 : i32
    return %c0_i32, %c0_i32_0 : i32, i32
  }
  func.func @transform_3(%arg0: i32) -> (i32, i32) {
    %c0_i32 = arith.constant 0 : i32
    %c0_i32_0 = arith.constant 0 : i32
    return %arg0, %c0_i32 : i32, i32
  }
}

</mosaic_0001>

<llo_original>
// kernel: tpu_custom_call.1
$region0: #{tpu_custom_call.1}
  #allocation0 [shape = 'u32[]', space=smem, size = 0x4, offset = 0x4, fixed_abs, tag = 'smem constant byte address 0x4 - core index']
  #allocation1 [shape = 'u32[144,128]{1,0:T(1,128)}', space=vmem, size = 0x12000, scoped, tag = 'internal scratch']
  %s0 = inlined_call_operand.hbm [shape: f32[384,128], index: 0, kind: input, shape index: {}]
  %s1 = inlined_call_operand.hbm [shape: f32[128,128], index: 1, kind: input, shape index: {}]
  %s2 = inlined_call_operand.vmem [shape: f32[1,128], index: 2, kind: input, shape index: {}]
  %s3 = inlined_call_operand.hbm [shape: f32[384,128], index: 3, kind: output, shape index: {}]
  %s4 = sld [smem:[#allocation0]]
  $region53: #{tpu_custom_call.1} parent=0
    _
  %s6 = ssub.s32 1, %s4
  %s7 = scalar_select 0, %s6, %s4
  $region1: #{tpu_custom_call.1} parent=0
    #allocation2 [shape = 'u8[131072]{0}', space=vmem, size = 0x20000, scoped, tag = 'input window, operand 0']
    #allocation3 [shape = 's32[2]{0}', space=sflag, size = 0x8, scoped, tag = 'scoped memory for tpu_custom_call.1']
    #allocation4 [shape = 's32[2]{0}', space=sflag, size = 0x8, scoped, tag = 'scoped memory for tpu_custom_call.1']
    #allocation5 [shape = 'u8[65536]{0}', space=vmem, size = 0x10000, scoped, tag = 'input window, operand 1, single buffered']
    #allocation6 [shape = 's32[1]{0}', space=sflag, size = 0x4, scoped, tag = 'scoped memory for tpu_custom_call.1']
    #allocation7 [shape = 'u8[131072]{0}', space=vmem, size = 0x20000, scoped, tag = 'output window, operand 0']
    %8 = vsyncpa [#allocation3], 0
    %s9 = scalar_lea.sflag [#allocation3], 1
    %10 = vsyncpa %s9, 0
    %11 = vsyncpa [#allocation6], 0
    %12 = vsyncpa [#allocation4], 0
    %s13 = scalar_lea.sflag [#allocation4], 1
    %14 = vsyncpa %s13, 0
    loop: start=0, step=1, limit=5
    $region2: #{tpu_custom_call.1} parent=1 // loop_pre_header
      _
    $region3: #{tpu_custom_call.1} parent=1 // loop_header
      %s16 = sphi 0, %s20
      %p17 = scmp.ge.s32.totalorder %s16, 5
      %s26 = sphi 0, %s28
      %s29 = sphi 0, %s26
      %s30 = sphi 0, %s29
      %s46 = sphi 0, %s30
      %s50 = sphi 0, %s50
      %s52 = sphi 0, %s50
      %s53 = sphi 0, %s52
      %s67 = sphi 0, %s53
      %s71 = sphi 0, %s71
      %s73 = sphi 0, %s71
      %s74 = sphi 0, %s73
      %s88 = sphi 0, %s74
      %s94 = sphi 0, %s96
      %s97 = sphi 0, %s94
      %s98 = sphi 0, %s97
      %s114 = sphi 0, %s98
    $region4: #{tpu_custom_call.1} parent=1 // loop_header_branch
      %19 = sbr.rel (%p17) target = $region8
    $region5: #{tpu_custom_call.1} parent=1 // loop_body
      %s21 = ssub.s32 %s16, 1
      %s22 = ssub.s32 %s16, 2
      %s23 = sadd.s32 %s16, 1
      %s24 = ssub.s32 %s16, %s23
      %p25 = scmp.eq.s32.totalorder %s24, 0
      %s27 = sadd.s32 %s26, 1
      %s28 = scalar_select %p25, %s26, %s27
      %p31 = pneg %p25
      %p32 = scmp.eq.s32.totalorder %s16, 2
      %p33 = por %p31, %p32
      %p34 = scmp.ne.s32.totalorder %s26, %s29
      %p35 = scmp.eq.s32.totalorder %s16, 0
      %p36 = por %p34, %p35
      %p37 = scmp.ne.s32.totalorder %s26, %s29
      %p38 = scmp.eq.s32.totalorder %s21, 2
      %p39 = por %p37, %p38
      %p40 = scmp.ne.s32.totalorder %s29, %s30
      %p41 = scmp.eq.s32.totalorder %s21, 0
      %p42 = por %p40, %p41
      %p43 = scmp.ne.s32.totalorder %s29, %s30
      %p44 = scmp.eq.s32.totalorder %s22, 2
      %p45 = por %p43, %p44
      %p47 = scmp.ne.s32.totalorder %s30, %s46
      %p48 = scmp.eq.s32.totalorder %s22, 0
      %p49 = por %p47, %p48
      %s51 = sadd.s32 %s50, 1
      %p54 = scmp.eq.s32.totalorder %s16, 2
      %p55 = scmp.ne.s32.totalorder %s50, %s52
      %p56 = scmp.eq.s32.totalorder %s16, 0
      %p57 = por %p55, %p56
      %p58 = scmp.ne.s32.totalorder %s50, %s52
      %p59 = scmp.eq.s32.totalorder %s21, 2
      %p60 = por %p58, %p59
      %p61 = scmp.ne.s32.totalorder %s52, %s53
      %p62 = scmp.eq.s32.totalorder %s21, 0
      %p63 = por %p61, %p62
      %p64 = scmp.ne.s32.totalorder %s52, %s53
      %p65 = scmp.eq.s32.totalorder %s22, 2
      %p66 = por %p64, %p65
      %p68 = scmp.ne.s32.totalorder %s53, %s67
      %p69 = scmp.eq.s32.totalorder %s22, 0
      %p70 = por %p68, %p69
      %s72 = sadd.s32 %s71, 1
      %p75 = scmp.eq.s32.totalorder %s16, 2
      %p76 = scmp.ne.s32.totalorder %s71, %s73
      %p77 = scmp.eq.s32.totalorder %s16, 0
      %p78 = por %p76, %p77
      %p79 = scmp.ne.s32.totalorder %s71, %s73
      %p80 = scmp.eq.s32.totalorder %s21, 2
      %p81 = por %p79, %p80
      %p82 = scmp.ne.s32.totalorder %s73, %s74
      %p83 = scmp.eq.s32.totalorder %s21, 0
      %p84 = por %p82, %p83
      %p85 = scmp.ne.s32.totalorder %s73, %s74
      %p86 = scmp.eq.s32.totalorder %s22, 2
      %p87 = por %p85, %p86
      %p89 = scmp.ne.s32.totalorder %s74, %s88
      %p90 = scmp.eq.s32.totalorder %s22, 0
      %p91 = por %p89, %p90
      %s92 = ssub.s32 %s16, %s23
      %p93 = scmp.eq.s32.totalorder %s92, 0
      %s95 = sadd.s32 %s94, 1
      %s96 = scalar_select %p93, %s94, %s95
      %p99 = pneg %p93
      %p100 = scmp.eq.s32.totalorder %s16, 2
      %p101 = por %p99, %p100
      %p102 = scmp.ne.s32.totalorder %s94, %s97
      %p103 = scmp.eq.s32.totalorder %s16, 0
      %p104 = por %p102, %p103
      %p105 = scmp.ne.s32.totalorder %s94, %s97
      %p106 = scmp.eq.s32.totalorder %s21, 2
      %p107 = por %p105, %p106
      %p108 = scmp.ne.s32.totalorder %s97, %s98
      %p109 = scmp.eq.s32.totalorder %s21, 0
      %p110 = por %p108, %p109
      %p111 = scmp.ne.s32.totalorder %s97, %s98
      %p112 = scmp.eq.s32.totalorder %s22, 2
      %p113 = por %p111, %p112
      %p115 = scmp.ne.s32.totalorder %s98, %s114
      %p116 = scmp.eq.s32.totalorder %s22, 0
      %p117 = por %p115, %p116
      %p118 = scmp.le.s32.totalorder 1, %s16
      %p119 = scmp.lt.s32.totalorder %s16, 4
      %p120 = pnand %p118, %p119
      %p121 = pneg %p120
      // Predicated region
      $region9: #{tpu_custom_call.1} parent=5 // pred_check
        _
      $region10: #{tpu_custom_call.1} parent=5 // pred_check_branch
        %123 = sbr.rel (%p120) target = $region12
      $region11: #{tpu_custom_call.1} parent=5 // pred_region
        %s124 = ssub.s32 %s16, 1
        // Predicated region
        $region13: #{tpu_custom_call.1} parent=11 // pred_check
          %p125 = pneg %p63
        $region14: #{tpu_custom_call.1} parent=11 // pred_check_branch
          %127 = sbr.rel (%p125) target = $region16
        $region15: #{tpu_custom_call.1} parent=11 // pred_region
          %s129 = ssub.s32 2048, 2048
          %130 = vsyncadd [#allocation6], %s129
          %s131 = sshll.u32 [#allocation5], 4
          %s132 = int_to_ptr.vmem [resolvable:$true] %s131
          %137 = dma.hbm_to_vmem [thread:$0]  %s1, 2048, %s132, [#allocation6], 128, 128, 8
        $region16: #{tpu_custom_call.1} parent=11 // pred_fallthru
          _
        // Predicated region
        $region17: #{tpu_custom_call.1} parent=11 // pred_check
          %p138 = pneg %p84
        $region18: #{tpu_custom_call.1} parent=11 // pred_check_branch
          %140 = sbr.rel (%p138) target = $region20
        $region19: #{tpu_custom_call.1} parent=11 // pred_region
          _
        $region20: #{tpu_custom_call.1} parent=11 // pred_fallthru
          _
      $region12: #{tpu_custom_call.1} parent=5 // pred_fallthru
        _
      %p141 = scmp.lt.s32.totalorder %s16, 3
      // Predicated region
      $region21: #{tpu_custom_call.1} parent=5 // pred_check
        %p142 = pneg %p141
      $region22: #{tpu_custom_call.1} parent=5 // pred_check_branch
        %144 = sbr.rel (%p142) target = $region24
      $region23: #{tpu_custom_call.1} parent=5 // pred_region
        // Predicated region
        $region25: #{tpu_custom_call.1} parent=23 // pred_check
          %p145 = pneg %p36
        $region26: #{tpu_custom_call.1} parent=23 // pred_check_branch
          %147 = sbr.rel (%p145) target = $region28
        $region27: #{tpu_custom_call.1} parent=23 // pred_region
          %s148 = sand.u32 %s26, 1
          %s149 = scalar_lea.sflag [#allocation3], %s148
          %s150 = sand.u32 %s26, 1
          %s151 = smul.addr %s150, 128
          %s152 = scalar_lea.vmem [#allocation2], %s151
          %s153 = smul.u32 16, %s16
          %s155 = ssub.s32 2048, 2048
          %156 = vsyncadd %s149, %s155
          %s157 = smul.addr %s153, 128
          %s158 = scalar_lea.hbm %s0, %s157
          %s159 = sshll.u32 %s152, 4
          %s160 = int_to_ptr.vmem [resolvable:$true] %s159
          %165 = dma.hbm_to_vmem [thread:$0]  %s158, 2048, %s160, %s149, 128, 128, 8
        $region28: #{tpu_custom_call.1} parent=23 // pred_fallthru
          _
      $region24: #{tpu_custom_call.1} parent=5 // pred_fallthru
        _
      %p166 = scmp.le.s32.totalorder 1, %s16
      %p167 = scmp.lt.s32.totalorder %s16, 4
      %p168 = pnand %p166, %p167
      %p169 = pneg %p168
      // Predicated region
      $region29: #{tpu_custom_call.1} parent=5 // pred_check
        _
      $region30: #{tpu_custom_call.1} parent=5 // pred_check_branch
        %171 = sbr.rel (%p168) target = $region32
      $region31: #{tpu_custom_call.1} parent=5 // pred_region
        %s172 = ssub.s32 %s16, 1
        %s173 = sand.u32 %s29, 1
        %s174 = scalar_lea.sflag [#allocation3], %s173
        %s175 = sand.u32 %s29, 1
        %s176 = smul.addr %s175, 128
        %s177 = scalar_lea.vmem [#allocation2], %s176
        // Predicated region
        $region33: #{tpu_custom_call.1} parent=31 // pred_check
          %p178 = pneg %p42
        $region34: #{tpu_custom_call.1} parent=31 // pred_check_branch
          %180 = sbr.rel (%p178) target = $region36
        $region35: #{tpu_custom_call.1} parent=31 // pred_region
          %181 = dma.done %s174, 2048
        $region36: #{tpu_custom_call.1} parent=31 // pred_fallthru
          _
        // Predicated region
        $region37: #{tpu_custom_call.1} parent=31 // pred_check
          %p182 = pneg %p63
        $region38: #{tpu_custom_call.1} parent=31 // pred_check_branch
          %184 = sbr.rel (%p182) target = $region40
        $region39: #{tpu_custom_call.1} parent=31 // pred_region
          %185 = dma.done [#allocation6], 2048
        $region40: #{tpu_custom_call.1} parent=31 // pred_fallthru
          _
        %s186 = sand.u32 %s29, 1
        %s187 = scalar_lea.sflag [#allocation3], %s186
        %s188 = sand.u32 %s29, 1
        %s189 = smul.addr %s188, 128
        %s190 = scalar_lea.vmem [#allocation2], %s189
        %p191 = pneg %p42
        %p192 = pneg %p39
        %p193 = pneg %p63
        %p194 = pneg %p60
        %p195 = pneg %p84
        %p196 = pneg %p81
        %p197 = pneg %p110
        %p198 = pneg %p107
        %s199 = sand.u32 %s97, 1
        %s200 = scalar_lea.sflag [#allocation4], %s199
        %s201 = sand.u32 %s97, 1
        %s202 = smul.addr %s201, 128
        %s203 = scalar_lea.vmem [#allocation7], %s202
        %s204 = smul.u32 16, %s21
        %s205 = smul.u32 16, %s21
        %v206 = vld [vmem:[%s177] sm:$0xff]
        %v207 = vld [vmem:[%s177 + $0x8] sm:$0xff]
        %v208 = vld [vmem:[%s177 + $0x10] sm:$0xff]
        %v209 = vld [vmem:[%s177 + $0x18] sm:$0xff]
        %v210 = vld [vmem:[%s177 + $0x20] sm:$0xff]
        %v211 = vld [vmem:[%s177 + $0x28] sm:$0xff]
        %v212 = vld [vmem:[%s177 + $0x30] sm:$0xff]
        %v213 = vld [vmem:[%s177 + $0x38] sm:$0xff]
        %v214 = vld [vmem:[%s177 + $0x40] sm:$0xff]
        %v215 = vld [vmem:[%s177 + $0x48] sm:$0xff]
        %v216 = vld [vmem:[%s177 + $0x50] sm:$0xff]
        %v217 = vld [vmem:[%s177 + $0x58] sm:$0xff]
        %v218 = vld [vmem:[%s177 + $0x60] sm:$0xff]
        %v219 = vld [vmem:[%s177 + $0x68] sm:$0xff]
        %v220 = vld [vmem:[%s177 + $0x70] sm:$0xff]
        %v221 = vld [vmem:[%s177 + $0x78] sm:$0xff]
        %v222 = vld [vmem:[#allocation5] sm:$0xff]
        %v223 = vld [vmem:[#allocation5 + $0x8] sm:$0xff]
        %v224 = vld [vmem:[#allocation5 + $0x10] sm:$0xff]
        %v225 = vld [vmem:[#allocation5 + $0x18] sm:$0xff]
        %v226 = vld [vmem:[#allocation5 + $0x20] sm:$0xff]
        %v227 = vld [vmem:[#allocation5 + $0x28] sm:$0xff]
        %v228 = vld [vmem:[#allocation5 + $0x30] sm:$0xff]
        %v229 = vld [vmem:[#allocation5 + $0x38] sm:$0xff]
        %v230 = vld [vmem:[#allocation5 + $0x40] sm:$0xff]
        %v231 = vld [vmem:[#allocation5 + $0x48] sm:$0xff]
        %v232 = vld [vmem:[#allocation5 + $0x50] sm:$0xff]
        %v233 = vld [vmem:[#allocation5 + $0x58] sm:$0xff]
        %v234 = vld [vmem:[#allocation5 + $0x60] sm:$0xff]
        %v235 = vld [vmem:[#allocation5 + $0x68] sm:$0xff]
        %v236 = vld [vmem:[#allocation5 + $0x70] sm:$0xff]
        %v237 = vld [vmem:[#allocation5 + $0x78] sm:$0xff]
        %v238 = vld [vmem:[%s2] sm:$0x1]
        %v240 = vlaneseq
        %v241 = vshrl.u32 %v240, 7
        %v242 = vsub.s32 0, %v241
        %v243 = vrot.slane %v238, %v242
        %245 = vmatprep.subr.mxu0 0.0
        %246 = vmatpush1.msra.mxu0 %v222
        %247 = vmatprep.subr.mxu0 0.0
        %248 = vmatpush1.msra.mxu0 %v223
        %249 = vmatprep.subr.mxu0 0.0
        %250 = vmatpush1.msra.mxu0 %v224
        %251 = vmatprep.subr.mxu0 0.0
        %252 = vmatpush1.msra.mxu0 %v225
        %253 = vmatprep.subr.mxu0 0.0
        %254 = vmatpush1.msra.mxu0 %v226
        %255 = vmatprep.subr.mxu0 0.0
        %256 = vmatpush1.msra.mxu0 %v227
        %257 = vmatprep.subr.mxu0 0.0
        %258 = vmatpush1.msra.mxu0 %v228
        %259 = vmatprep.subr.mxu0 0.0
        %260 = vmatpush1.msra.mxu0 %v229
        %261 = vmatprep.subr.mxu0 0.0
        %262 = vmatpush1.msra.mxu0 %v230
        %263 = vmatprep.subr.mxu0 0.0
        %264 = vmatpush1.msra.mxu0 %v231
        %265 = vmatprep.subr.mxu0 0.0
        %266 = vmatpush1.msra.mxu0 %v232
        %267 = vmatprep.subr.mxu0 0.0
        %268 = vmatpush1.msra.mxu0 %v233
        %269 = vmatprep.subr.mxu0 0.0
        %270 = vmatpush1.msra.mxu0 %v234
        %271 = vmatprep.subr.mxu0 0.0
        %272 = vmatpush1.msra.mxu0 %v235
        %273 = vmatprep.subr.mxu0 0.0
        %274 = vmatpush1.msra.mxu0 %v236
        %275 = vmatprep.subr.mxu0 0.0
        %276 = vmatpush1.msra.mxu0 %v237
        %277 = vmatprep.subr.mxu0 0.0
        %278 = vmatpush1.msra.mxu0 0.0
        %279 = vmatprep.subr.mxu0 0.0
        %280 = vmatpush1.msra.mxu0 0.0
        %281 = vmatprep.subr.mxu0 0.0
        %282 = vmatpush1.msra.mxu0 0.0
        %283 = vmatprep.subr.mxu0 0.0
        %284 = vmatpush1.msra.mxu0 0.0
        %285 = vmatprep.subr.mxu0 0.0
        %286 = vmatpush1.msra.mxu0 0.0
        %287 = vmatprep.subr.mxu0 0.0
        %288 = vmatpush1.msra.mxu0 0.0
        %289 = vmatprep.subr.mxu0 0.0
        %290 = vmatpush1.msra.mxu0 0.0
        %291 = vmatprep.subr.mxu0 0.0
        %292 = vmatpush1.msra.mxu0 0.0
        %293 = vmatprep.subr.mxu0 0.0
        %294 = vmatpush1.msra.mxu0 0.0
        %295 = vmatprep.subr.mxu0 0.0
        %296 = vmatpush1.msra.mxu0 0.0
        %297 = vmatprep.subr.mxu0 0.0
        %298 = vmatpush1.msra.mxu0 0.0
        %299 = vmatprep.subr.mxu0 0.0
        %300 = vmatpush1.msra.mxu0 0.0
        %301 = vmatprep.subr.mxu0 0.0
        %302 = vmatpush1.msra.mxu0 0.0
        %303 = vmatprep.subr.mxu0 0.0
        %304 = vmatpush1.msra.mxu0 0.0
        %305 = vmatprep.subr.mxu0 0.0
        %306 = vmatpush1.msra.mxu0 0.0
        %307 = vmatprep.subr.mxu0 0.0
        %308 = vmatpush1.msra.mxu0 0.0
        %309 = vmatprep.mubr.f32.mxu0 0.0
        %310 = vmatmul.mubr.f32.gmra.mrb[0].mxu0 %v206
        %v311 = vpop.f32.mrb[0].mxu0
        %v312 = vadd.f32 %v243, %v311
        %v313 = vpop.f32.mrb[0].mxu0
        %314 = vmatprep.mubr.f32.mxu0 0.0
        %315 = vmatmul.mubr.f32.gmra.mrb[0].mxu0 %v207
        %v316 = vpop.f32.mrb[0].mxu0
        %v317 = vadd.f32 %v243, %v316
        %v318 = vpop.f32.mrb[0].mxu0
        %319 = vmatprep.mubr.f32.mxu0 0.0
        %320 = vmatmul.mubr.f32.gmra.mrb[0].mxu0 %v208
        %v321 = vpop.f32.mrb[0].mxu0
        %v322 = vadd.f32 %v243, %v321
        %v323 = vpop.f32.mrb[0].mxu0
        %324 = vmatprep.mubr.f32.mxu0 0.0
        %325 = vmatmul.mubr.f32.gmra.mrb[0].mxu0 %v209
        %v326 = vpop.f32.mrb[0].mxu0
        %v327 = vadd.f32 %v243, %v326
        %v328 = vpop.f32.mrb[0].mxu0
        %329 = vmatprep.mubr.f32.mxu0 0.0
        %330 = vmatmul.mubr.f32.gmra.mrb[0].mxu0 %v210
        %v331 = vpop.f32.mrb[0].mxu0
        %v332 = vadd.f32 %v243, %v331
        %v333 = vpop.f32.mrb[0].mxu0
        %334 = vmatprep.mubr.f32.mxu0 0.0
        %335 = vmatmul.mubr.f32.gmra.mrb[0].mxu0 %v211
        %v336 = vpop.f32.mrb[0].mxu0
        %v337 = vadd.f32 %v243, %v336
        %v338 = vpop.f32.mrb[0].mxu0
        %339 = vmatprep.mubr.f32.mxu0 0.0
        %340 = vmatmul.mubr.f32.gmra.mrb[0].mxu0 %v212
        %v341 = vpop.f32.mrb[0].mxu0
        %v342 = vadd.f32 %v243, %v341
        %v343 = vpop.f32.mrb[0].mxu0
        %344 = vmatprep.mubr.f32.mxu0 0.0
        %345 = vmatmul.mubr.f32.gmra.mrb[0].mxu0 %v213
        %v346 = vpop.f32.mrb[0].mxu0
        %v347 = vadd.f32 %v243, %v346
        %v348 = vpop.f32.mrb[0].mxu0
        %349 = vmatprep.mubr.f32.mxu0 0.0
        %350 = vmatmul.mubr.f32.gmra.mrb[0].mxu0 %v214
        %v351 = vpop.f32.mrb[0].mxu0
        %v352 = vadd.f32 %v243, %v351
        %v353 = vpop.f32.mrb[0].mxu0
        %354 = vmatprep.mubr.f32.mxu0 0.0
        %355 = vmatmul.mubr.f32.gmra.mrb[0].mxu0 %v215
        %v356 = vpop.f32.mrb[0].mxu0
        %v357 = vadd.f32 %v243, %v356
        %v358 = vpop.f32.mrb[0].mxu0
        %359 = vmatprep.mubr.f32.mxu0 0.0
        %360 = vmatmul.mubr.f32.gmra.mrb[0].mxu0 %v216
        %v361 = vpop.f32.mrb[0].mxu0
        %v362 = vadd.f32 %v243, %v361
        %v363 = vpop.f32.mrb[0].mxu0
        %364 = vmatprep.mubr.f32.mxu0 0.0
        %365 = vmatmul.mubr.f32.gmra.mrb[0].mxu0 %v217
        %v366 = vpop.f32.mrb[0].mxu0
        %v367 = vadd.f32 %v243, %v366
        %v368 = vpop.f32.mrb[0].mxu0
        %369 = vmatprep.mubr.f32.mxu0 0.0
        %370 = vmatmul.mubr.f32.gmra.mrb[0].mxu0 %v218
        %v371 = vpop.f32.mrb[0].mxu0
        %v372 = vadd.f32 %v243, %v371
        %v373 = vpop.f32.mrb[0].mxu0
        %374 = vmatprep.mubr.f32.mxu0 0.0
        %375 = vmatmul.mubr.f32.gmra.mrb[0].mxu0 %v219
        %v376 = vpop.f32.mrb[0].mxu0
        %v377 = vadd.f32 %v243, %v376
        %v378 = vpop.f32.mrb[0].mxu0
        %379 = vmatprep.mubr.f32.mxu0 0.0
        %380 = vmatmul.mubr.f32.gmra.mrb[0].mxu0 %v220
        %v381 = vpop.f32.mrb[0].mxu0
        %v382 = vadd.f32 %v243, %v381
        %v383 = vpop.f32.mrb[0].mxu0
        %384 = vmatprep.mubr.f32.mxu0 0.0
        %385 = vmatmul.mubr.f32.gmra.mrb[0].mxu0 %v221
        %v386 = vpop.f32.mrb[0].mxu0
        %v387 = vadd.f32 %v243, %v386
        %v388 = vpop.f32.mrb[0].mxu0
        %389 = vdwg.mxu0
        %vm390 = vcmp.gt.f32.partialorder %v312, 0.0
        %vm391 = vcmp.gt.f32.partialorder %v317, 0.0
        %vm392 = vcmp.gt.f32.partialorder %v322, 0.0
        %vm393 = vcmp.gt.f32.partialorder %v327, 0.0
        %vm394 = vcmp.gt.f32.partialorder %v332, 0.0
        %vm395 = vcmp.gt.f32.partialorder %v337, 0.0
        %vm396 = vcmp.gt.f32.partialorder %v342, 0.0
        %vm397 = vcmp.gt.f32.partialorder %v347, 0.0
        %vm398 = vcmp.gt.f32.partialorder %v352, 0.0
        %vm399 = vcmp.gt.f32.partialorder %v357, 0.0
        %vm400 = vcmp.gt.f32.partialorder %v362, 0.0
        %vm401 = vcmp.gt.f32.partialorder %v367, 0.0
        %vm402 = vcmp.gt.f32.partialorder %v372, 0.0
        %vm403 = vcmp.gt.f32.partialorder %v377, 0.0
        %vm404 = vcmp.gt.f32.partialorder %v382, 0.0
        %vm405 = vcmp.gt.f32.partialorder %v387, 0.0
        %v406 = vmul.f32 %v312, 0.01
        %v407 = vmul.f32 %v317, 0.01
        %v408 = vmul.f32 %v322, 0.01
        %v409 = vmul.f32 %v327, 0.01
        %v410 = vmul.f32 %v332, 0.01
        %v411 = vmul.f32 %v337, 0.01
        %v412 = vmul.f32 %v342, 0.01
        %v413 = vmul.f32 %v347, 0.01
        %v414 = vmul.f32 %v352, 0.01
        %v415 = vmul.f32 %v357, 0.01
        %v416 = vmul.f32 %v362, 0.01
        %v417 = vmul.f32 %v367, 0.01
        %v418 = vmul.f32 %v372, 0.01
        %v419 = vmul.f32 %v377, 0.01
        %v420 = vmul.f32 %v382, 0.01
        %v421 = vmul.f32 %v387, 0.01
        %v422 = vsel %vm390, %v312, %v406
        %v423 = vsel %vm391, %v317, %v407
        %v424 = vsel %vm392, %v322, %v408
        %v425 = vsel %vm393, %v327, %v409
        %v426 = vsel %vm394, %v332, %v410
        %v427 = vsel %vm395, %v337, %v411
        %v428 = vsel %vm396, %v342, %v412
        %v429 = vsel %vm397, %v347, %v413
        %v430 = vsel %vm398, %v352, %v414
        %v431 = vsel %vm399, %v357, %v415
        %v432 = vsel %vm400, %v362, %v416
        %v433 = vsel %vm401, %v367, %v417
        %v434 = vsel %vm402, %v372, %v418
        %v435 = vsel %vm403, %v377, %v419
        %v436 = vsel %vm404, %v382, %v420
        %v437 = vsel %vm405, %v387, %v421
        %438 = vst [vmem:[%s203] sm:$0xff] %v422
        %439 = vst [vmem:[%s203 + $0x8] sm:$0xff] %v423
        %440 = vst [vmem:[%s203 + $0x10] sm:$0xff] %v424
        %441 = vst [vmem:[%s203 + $0x18] sm:$0xff] %v425
        %442 = vst [vmem:[%s203 + $0x20] sm:$0xff] %v426
        %443 = vst [vmem:[%s203 + $0x28] sm:$0xff] %v427
        %444 = vst [vmem:[%s203 + $0x30] sm:$0xff] %v428
        %445 = vst [vmem:[%s203 + $0x38] sm:$0xff] %v429
        %446 = vst [vmem:[%s203 + $0x40] sm:$0xff] %v430
        %447 = vst [vmem:[%s203 + $0x48] sm:$0xff] %v431
        %448 = vst [vmem:[%s203 + $0x50] sm:$0xff] %v432
        %449 = vst [vmem:[%s203 + $0x58] sm:$0xff] %v433
        %450 = vst [vmem:[%s203 + $0x60] sm:$0xff] %v434
        %451 = vst [vmem:[%s203 + $0x68] sm:$0xff] %v435
        %452 = vst [vmem:[%s203 + $0x70] sm:$0xff] %v436
        %453 = vst [vmem:[%s203 + $0x78] sm:$0xff] %v437
        %s454 = sand.u32 %s97, 1
        %s455 = scalar_lea.sflag [#allocation4], %s454
        %s456 = sand.u32 %s97, 1
        %s457 = smul.addr %s456, 128
        %s458 = scalar_lea.vmem [#allocation7], %s457
        // Predicated region
        $region41: #{tpu_custom_call.1} parent=31 // pred_check
          %p459 = pneg %p107
        $region42: #{tpu_custom_call.1} parent=31 // pred_check_branch
          %461 = sbr.rel (%p459) target = $region44
        $region43: #{tpu_custom_call.1} parent=31 // pred_region
          %s462 = smul.u32 16, %s21
          %s464 = ssub.s32 2048, 2048
          %465 = vsyncadd %s455, %s464
          %s466 = smul.addr %s462, 128
          %s467 = scalar_lea.hbm %s3, %s466
          %s468 = sshll.u32 %s458, 4
          %s469 = int_to_ptr.vmem [resolvable:$true] %s468
          %474 = dma.vmem_to_hbm [thread:$0]  %s469, 2048, %s467, %s455, 128, 128, 8
        $region44: #{tpu_custom_call.1} parent=31 // pred_fallthru
          _
      $region32: #{tpu_custom_call.1} parent=5 // pred_fallthru
        _
      %p475 = scmp.le.s32.totalorder 2, %s16
      // Predicated region
      $region45: #{tpu_custom_call.1} parent=5 // pred_check
        %p476 = pneg %p475
      $region46: #{tpu_custom_call.1} parent=5 // pred_check_branch
        %478 = sbr.rel (%p476) target = $region48
      $region47: #{tpu_custom_call.1} parent=5 // pred_region
        %s479 = ssub.s32 %s16, 2
        // Predicated region
        $region49: #{tpu_custom_call.1} parent=47 // pred_check
          %p480 = pneg %p113
        $region50: #{tpu_custom_call.1} parent=47 // pred_check_branch
          %482 = sbr.rel (%p480) target = $region52
        $region51: #{tpu_custom_call.1} parent=47 // pred_region
          %s483 = sand.u32 %s98, 1
          %s484 = scalar_lea.sflag [#allocation4], %s483
          %s485 = sand.u32 %s98, 1
          %s486 = smul.addr %s485, 128
          %s487 = scalar_lea.vmem [#allocation7], %s486
          %488 = dma.done %s484, 2048
        $region52: #{tpu_custom_call.1} parent=47 // pred_fallthru
          _
      $region48: #{tpu_custom_call.1} parent=5 // pred_fallthru
        _
    $region6: #{tpu_custom_call.1} parent=1 // loop_footer
      %s20 = sadd.s32 1, %s16
    $region7: #{tpu_custom_call.1} parent=1 // loop_footer_branch
      %15 = sbr.rel target = $region3
    $region8: #{tpu_custom_call.1} parent=1 // loop_exit
      _
    %489 = vsyncpa [#allocation3], 1
    %s490 = scalar_lea.sflag [#allocation3], 1
    %491 = vsyncpa %s490, 1
    %492 = vsyncpa [#allocation6], 1
    %493 = vsyncpa [#allocation4], 1
    %s494 = scalar_lea.sflag [#allocation4], 1
    %495 = vsyncpa %s494, 1

</llo_original>
